<compile_context>
chip_gen: v7x
topology: tpu7x:2x2x1
jax: 0.10.0
libtpu: 0.0.40
codegen_flags: <defaults>
</compile_context>

<pallas_src>
import math
import functools

import jax
import jax.numpy as jnp
from jax.experimental import pallas as pl
from jax.experimental.pallas import tpu as pltpu


# ---------------------------------------------------------------------------
# Buffer setup (mirrors nn.Module.__init__; deterministic)
# ---------------------------------------------------------------------------
def make_positional_table(d_model: int, max_len: int = 200) -> jnp.ndarray:
    """Returns pe with shape (max_len, 1, d_model), same as the PyTorch buffer."""
    position = jnp.arange(max_len, dtype=jnp.float32)[:, None]            # (L, 1)
    div_term = jnp.exp(
        jnp.arange(0, d_model, 2, dtype=jnp.float32) * (-math.log(10000.0) / d_model)
    )                                                                     # (D/2,)
    angles = position * div_term                                          # (L, D/2)
    pe = jnp.zeros((max_len, d_model), dtype=jnp.float32)
    pe = pe.at[:, 0::2].set(jnp.sin(angles))
    pe = pe.at[:, 1::2].set(jnp.cos(angles))
    return pe[:, None, :]                                                 # (L, 1, D)


# ---------------------------------------------------------------------------
# Pallas kernel: out = dropout(x + pe)   on lane-dense (tile_s, B*D) blocks
# ---------------------------------------------------------------------------
def _pe_kernel(seed_ref, x_ref, pe_ref, o_ref, *,
               dropout_p: float, training: bool, seq_tile: int,
               pe_resident: bool, keep_threshold: int):
    tile_start = pl.multiple_of(pl.program_id(0) * seq_tile, seq_tile)

    if pe_resident:
        # pe_ref holds the full (S, B*D) table resident in VMEM; slice the rows
        # belonging to this tile.
        pe_blk = pe_ref[pl.ds(tile_start, seq_tile), :]
    else:
        pe_blk = pe_ref[...]

    y = x_ref[...] + pe_blk

    if training and dropout_p > 0.0:
        # Inverted dropout with a counter-based hash PRNG (pure jnp int ops:
        # lowers on Mosaic/TPU and in interpret mode, no extra HBM traffic).
        # One keep decision = murmur3-fmix32(global_elem_index ^ mixed_seed)
        # compared against a precomputed uint32 threshold.
        n_cols = y.shape[1]
        rows = jax.lax.broadcasted_iota(jnp.int32, y.shape, 0)
        cols = jax.lax.broadcasted_iota(jnp.int32, y.shape, 1)
        idx = (tile_start + rows) * jnp.int32(n_cols) + cols              # global id
        seed_u = seed_ref[0].astype(jnp.uint32) * jnp.uint32(0x9E3779B9)
        h = idx.astype(jnp.uint32) ^ seed_u
        h = h ^ (h >> jnp.uint32(16))
        h = h * jnp.uint32(0x85EBCA6B)
        h = h ^ (h >> jnp.uint32(13))
        h = h * jnp.uint32(0xC2B2AE35)
        h = h ^ (h >> jnp.uint32(16))
        keep = h < jnp.uint32(keep_threshold)
        scale = jnp.asarray(1.0 / (1.0 - dropout_p), dtype=y.dtype)
        y = jnp.where(keep, y * scale, jnp.zeros_like(y))

    o_ref[...] = y


# ---------------------------------------------------------------------------
# Tile selection: sublane-aligned divisor of S under a conservative VMEM budget
# ---------------------------------------------------------------------------
def _pick_seq_tile(S: int, row_bytes: int) -> int:
    budget = 8 * 1024 * 1024                      # ~half of v5e's 16 MiB scoped default
    max_rows = max(1, budget // (6 * row_bytes))  # x + pe + out, double-buffered
    cands = [d for d in range(1, S + 1)
             if S % d == 0 and (d % 8 == 0 or d == S) and d <= min(max_rows, 2048)]
    if not cands:
        return S                                  # degenerate tiny/odd S: one full block
    tile = max(cands)
    if tile == S:
        # Prefer >= 2 grid steps (keeps both v7x TensorCores busy) as long as the
        # split does not become pathologically small.
        proper = [d for d in cands if d < S]
        if proper and max(proper) * 8 >= S:
            tile = max(proper)
    return tile


# ---------------------------------------------------------------------------
# Forward wrapper
# ---------------------------------------------------------------------------
def positional_encoding_forward(
    x: jnp.ndarray,
    pe: jnp.ndarray,
    *,
    dropout_p: float = 0.1,
    training: bool = False,
    seed: int = 0,
    seq_tile: int | None = None,
) -> jnp.ndarray:
    """x: (S, B, D).  pe: (max_len, 1, D).  Returns (S, B, D)."""
    S, B, D = x.shape
    dtype = x.dtype
    itemsize = jnp.dtype(dtype).itemsize
    BD = B * D

    # Lane-dense 2D views: last dim is B*D (typically a multiple of 128) so
    # stores are full-width vst instead of masked partial stores.
    x2d = x.reshape(S, BD)
    pe2d = jnp.broadcast_to(pe[:S].astype(dtype), (S, B, D)).reshape(S, BD)

    if seq_tile is None:
        seq_tile = _pick_seq_tile(S, BD * itemsize)
    elif S % seq_tile != 0:
        raise ValueError(f"seq_tile={seq_tile} must evenly divide S={S}")
    grid = (S // seq_tile,)

    # Keep the positional table resident in VMEM (constant block index -> a
    # single DMA, zero per-step traffic) when it is small; otherwise tile it.
    pe_resident = (S * BD * itemsize) <= (2 * 1024 * 1024)

    keep_threshold = min(int(round((1.0 - float(dropout_p)) * 4294967296.0)),
                         4294967295)

    kernel = functools.partial(
        _pe_kernel,
        dropout_p=float(dropout_p), training=bool(training),
        seq_tile=seq_tile, pe_resident=pe_resident,
        keep_threshold=keep_threshold)

    if pe_resident:
        pe_spec = pl.BlockSpec((S, BD), lambda i, seed_ref: (0, 0))
    else:
        pe_spec = pl.BlockSpec((seq_tile, BD), lambda i, seed_ref: (i, 0))

    nbytes = itemsize * S * BD
    cost = pl.CostEstimate(
        flops=(3 if (training and dropout_p > 0.0) else 1) * S * BD,
        transcendentals=0,
        bytes_accessed=3 * nbytes,                     # read x, read pe, write out
    )

    out2d = pl.pallas_call(
        kernel,
        out_shape=jax.ShapeDtypeStruct((S, BD), dtype),
        grid_spec=pltpu.PrefetchScalarGridSpec(
            num_scalar_prefetch=1,                     # seed -> SMEM before grid runs
            grid=grid,
            in_specs=[
                pl.BlockSpec((seq_tile, BD), lambda i, seed_ref: (i, 0)),
                pe_spec,
            ],
            out_specs=pl.BlockSpec((seq_tile, BD), lambda i, seed_ref: (i, 0)),
        ),
        compiler_params=pltpu.CompilerParams(dimension_semantics=("parallel",)),
        cost_estimate=cost,
    )(jnp.asarray([seed], dtype=jnp.int32), x2d, pe2d)

    return out2d.reshape(S, B, D)


# ---------------------------------------------------------------------------
if __name__ == "__main__":
    S, B, D = 64, 4, 32          # seq=64, batch=4, d_model=32  -> lane dim B*D = 128
    max_len = 200
    p = 0.1

    key = jax.random.PRNGKey(0)
    x = jax.random.normal(key, (S, B, D), dtype=jnp.float32)
    pe = make_positional_table(D, max_len)
    ref = x + pe[:S]

    # Eval mode (dropout is identity) -> deterministic, checkable output.
    out = positional_encoding_forward(x, pe, dropout_p=p, training=False)
    out = jax.block_until_ready(out)
    assert out.shape == (S, B, D)
    assert jnp.allclose(out, ref, atol=1e-6, rtol=1e-6)

    # Training mode: stochastic, so only sanity checks (shape, scaling of kept
    # elements, plausible drop fraction).
    # TODO(synk): dropout uses an in-kernel counter-based PRNG; it is
    # distributionally equivalent to torch.nn.Dropout but not bit-identical to
    # torch's RNG stream.
    out_tr = positional_encoding_forward(x, pe, dropout_p=p, training=True, seed=123)
    out_tr = jax.block_until_ready(out_tr)
    assert out_tr.shape == (S, B, D)
    assert bool(jnp.all(jnp.isfinite(out_tr)))
    zero_frac = float(jnp.mean((out_tr == 0.0).astype(jnp.float32)))
    assert 0.02 < zero_frac < 0.30, f"unexpected drop fraction {zero_frac}"
    nz = out_tr != 0.0
    scaled_ref = ref * jnp.float32(1.0 / (1.0 - p))
    assert jnp.allclose(jnp.where(nz, out_tr, 0.0),
                        jnp.where(nz, scaled_ref, 0.0),
                        atol=1e-5, rtol=1e-5)

    print("KERNEL_OK")
</pallas_src>

<mosaic_0001>
module attributes {stable_mosaic.version = 11 : i64} {
  func.func @_pe_kernel(%arg0: i32, %arg1: memref<1xi32, #tpu.memory_space<smem>>, %arg2: memref<32x128xf32, #tpu.memory_space<vmem>>, %arg3: memref<64x128xf32, #tpu.memory_space<vmem>>, %arg4: memref<32x128xf32, #tpu.memory_space<vmem>>) attributes {dimension_semantics = [#tpu.dimension_semantics<parallel>], iteration_bounds = array<i64: 2>, scalar_prefetch = 1 : i64, scratch_operands = 0 : i64, tpu.core_type = #tpu.core_type<tc>, window_params = [{transform_indices = @transform_0, window_bounds = array<i64: 32, 128>}, {pipeline_mode = #tpu.pipeline_mode<synchronous>, transform_indices = @transform_1, window_bounds = array<i64: 64, 128>}, {transform_indices = @transform_2, window_bounds = array<i64: 32, 128>}]} {
    %c32_i32 = arith.constant 32 : i32
    %0 = arith.muli %arg0, %c32_i32 : i32
    %1 = tpu.assume_multiple %0, 32 : i32
    %2 = arith.index_cast %1 : i32 to index
    %c0 = arith.constant 0 : index
    %3 = vector.load %arg3[%2, %c0] : memref<64x128xf32, #tpu.memory_space<vmem>>, vector<32x128xf32>
    %c0_0 = arith.constant 0 : index
    %c0_1 = arith.constant 0 : index
    %4 = vector.load %arg2[%c0_0, %c0_1] : memref<32x128xf32, #tpu.memory_space<vmem>>, vector<32x128xf32>
    %5 = arith.addf %4, %3 : vector<32x128xf32>
    %c0_2 = arith.constant 0 : index
    %c0_3 = arith.constant 0 : index
    %6 = vector.load %arg4[%c0_2, %c0_3] : memref<32x128xf32, #tpu.memory_space<vmem>>, vector<32x128xf32>
    tpu.vector_store %arg4[%c0_2, %c0_3], %5 {strides = array<i32>} : memref<32x128xf32, #tpu.memory_space<vmem>>, vector<32x128xf32>,
    return
  }
  func.func @transform_0(%arg0: i32, %arg1: memref<1xi32, #tpu.memory_space<smem>>) -> (i32, i32) {
    %c0_i32 = arith.constant 0 : i32
    %c0_i32_0 = arith.constant 0 : i32
    return %arg0, %c0_i32 : i32, i32
  }
  func.func @transform_1(%arg0: i32, %arg1: memref<1xi32, #tpu.memory_space<smem>>) -> (i32, i32) {
    %c0_i32 = arith.constant 0 : i32
    %c0_i32_0 = arith.constant 0 : i32
    %c0_i32_1 = arith.constant 0 : i32
    return %c0_i32, %c0_i32_0 : i32, i32
  }
  func.func @transform_2(%arg0: i32, %arg1: memref<1xi32, #tpu.memory_space<smem>>) -> (i32, i32) {
    %c0_i32 = arith.constant 0 : i32
    %c0_i32_0 = arith.constant 0 : i32
    return %arg0, %c0_i32 : i32, i32
  }
}

</mosaic_0001>

<llo_original>
// kernel: tpu_custom_call.1
$region0: #{tpu_custom_call.1}
  #allocation0 [shape = 'u32[]', space=smem, size = 0x4, offset = 0x4, fixed_abs, tag = 'smem constant byte address 0x4 - core index']
  #allocation1 [shape = 'u32[144,128]{1,0:T(1,128)}', space=vmem, size = 0x12000, scoped, tag = 'internal scratch']
  #allocation2 [shape = 's32[1]{0}', space=sflag, size = 0x4, scoped, tag = 'scoped memory for tpu_custom_call.1']
  #allocation3 [shape = 's32[1]{0:T(128)S(6)}', space=smem, size = 0x200, scoped, tag = 'prefetched SMEM operand 0']
  %s0 = inlined_call_operand.<no memory space> [shape: s32[1], index: 0, kind: input, shape index: {}]
  %s1 = inlined_call_operand.hbm [shape: f32[64,128], index: 1, kind: input, shape index: {}]
  %s2 = inlined_call_operand.hbm [shape: f32[64,128], index: 2, kind: input, shape index: {}]
  %s3 = inlined_call_operand.hbm [shape: f32[64,128], index: 3, kind: output, shape index: {}]
  %s4 = sld [smem:[#allocation0]]
  $region49: #{tpu_custom_call.1} parent=0
    _
  %s6 = ssub.s32 1, %s4
  %s7 = scalar_select 0, %s6, %s4
  %8 = sst [smem:[#allocation3]] %s0
  $region1: #{tpu_custom_call.1} parent=0
    #allocation4 [shape = 'u8[32768]{0}', space=vmem, size = 0x8000, scoped, tag = 'input window, operand 1']
    #allocation5 [shape = 's32[2]{0}', space=sflag, size = 0x8, scoped, tag = 'scoped memory for tpu_custom_call.1']
    #allocation6 [shape = 's32[2]{0}', space=sflag, size = 0x8, scoped, tag = 'scoped memory for tpu_custom_call.1']
    #allocation7 [shape = 'u8[32768]{0}', space=vmem, size = 0x8000, scoped, tag = 'input window, operand 2, single buffered']
    #allocation8 [shape = 's32[1]{0}', space=sflag, size = 0x4, scoped, tag = 'scoped memory for tpu_custom_call.1']
    #allocation9 [shape = 'u8[32768]{0}', space=vmem, size = 0x8000, scoped, tag = 'output window, operand 0']
    %9 = vsyncpa [#allocation5], 0
    %s10 = scalar_lea.sflag [#allocation5], 1
    %11 = vsyncpa %s10, 0
    %12 = vsyncpa [#allocation8], 0
    %13 = vsyncpa [#allocation6], 0
    %s14 = scalar_lea.sflag [#allocation6], 1
    %15 = vsyncpa %s14, 0
    loop: start=0, step=1, limit=4
    $region2: #{tpu_custom_call.1} parent=1 // loop_pre_header
      _
    $region3: #{tpu_custom_call.1} parent=1 // loop_header
      %s17 = sphi 0, %s21
      %p18 = scmp.ge.s32.totalorder %s17, 4
      %s27 = sphi 0, %s29
      %s30 = sphi 0, %s27
      %s31 = sphi 0, %s30
      %s47 = sphi 0, %s31
      %s51 = sphi 0, %s51
      %s53 = sphi 0, %s51
      %s54 = sphi 0, %s53
      %s68 = sphi 0, %s54
      %s74 = sphi 0, %s76
      %s77 = sphi 0, %s74
      %s78 = sphi 0, %s77
      %s94 = sphi 0, %s78
    $region4: #{tpu_custom_call.1} parent=1 // loop_header_branch
      %20 = sbr.rel (%p18) target = $region8
    $region5: #{tpu_custom_call.1} parent=1 // loop_body
      %s22 = ssub.s32 %s17, 1
      %s23 = ssub.s32 %s17, 2
      %s24 = sadd.s32 %s17, 1
      %s25 = ssub.s32 %s17, %s24
      %p26 = scmp.eq.s32.totalorder %s25, 0
      %s28 = sadd.s32 %s27, 1
      %s29 = scalar_select %p26, %s27, %s28
      %p32 = pneg %p26
      %p33 = scmp.eq.s32.totalorder %s17, 1
      %p34 = por %p32, %p33
      %p35 = scmp.ne.s32.totalorder %s27, %s30
      %p36 = scmp.eq.s32.totalorder %s17, 0
      %p37 = por %p35, %p36
      %p38 = scmp.ne.s32.totalorder %s27, %s30
      %p39 = scmp.eq.s32.totalorder %s22, 1
      %p40 = por %p38, %p39
      %p41 = scmp.ne.s32.totalorder %s30, %s31
      %p42 = scmp.eq.s32.totalorder %s22, 0
      %p43 = por %p41, %p42
      %p44 = scmp.ne.s32.totalorder %s30, %s31
      %p45 = scmp.eq.s32.totalorder %s23, 1
      %p46 = por %p44, %p45
      %p48 = scmp.ne.s32.totalorder %s31, %s47
      %p49 = scmp.eq.s32.totalorder %s23, 0
      %p50 = por %p48, %p49
      %s52 = sadd.s32 %s51, 1
      %p55 = scmp.eq.s32.totalorder %s17, 1
      %p56 = scmp.ne.s32.totalorder %s51, %s53
      %p57 = scmp.eq.s32.totalorder %s17, 0
      %p58 = por %p56, %p57
      %p59 = scmp.ne.s32.totalorder %s51, %s53
      %p60 = scmp.eq.s32.totalorder %s22, 1
      %p61 = por %p59, %p60
      %p62 = scmp.ne.s32.totalorder %s53, %s54
      %p63 = scmp.eq.s32.totalorder %s22, 0
      %p64 = por %p62, %p63
      %p65 = scmp.ne.s32.totalorder %s53, %s54
      %p66 = scmp.eq.s32.totalorder %s23, 1
      %p67 = por %p65, %p66
      %p69 = scmp.ne.s32.totalorder %s54, %s68
      %p70 = scmp.eq.s32.totalorder %s23, 0
      %p71 = por %p69, %p70
      %s72 = ssub.s32 %s17, %s24
      %p73 = scmp.eq.s32.totalorder %s72, 0
      %s75 = sadd.s32 %s74, 1
      %s76 = scalar_select %p73, %s74, %s75
      %p79 = pneg %p73
      %p80 = scmp.eq.s32.totalorder %s17, 1
      %p81 = por %p79, %p80
      %p82 = scmp.ne.s32.totalorder %s74, %s77
      %p83 = scmp.eq.s32.totalorder %s17, 0
      %p84 = por %p82, %p83
      %p85 = scmp.ne.s32.totalorder %s74, %s77
      %p86 = scmp.eq.s32.totalorder %s22, 1
      %p87 = por %p85, %p86
      %p88 = scmp.ne.s32.totalorder %s77, %s78
      %p89 = scmp.eq.s32.totalorder %s22, 0
      %p90 = por %p88, %p89
      %p91 = scmp.ne.s32.totalorder %s77, %s78
      %p92 = scmp.eq.s32.totalorder %s23, 1
      %p93 = por %p91, %p92
      %p95 = scmp.ne.s32.totalorder %s78, %s94
      %p96 = scmp.eq.s32.totalorder %s23, 0
      %p97 = por %p95, %p96
      %p98 = scmp.le.s32.totalorder 1, %s17
      %p99 = scmp.lt.s32.totalorder %s17, 3
      %p100 = pnand %p98, %p99
      %p101 = pneg %p100
      // Predicated region
      $region9: #{tpu_custom_call.1} parent=5 // pred_check
        _
      $region10: #{tpu_custom_call.1} parent=5 // pred_check_branch
        %103 = sbr.rel (%p100) target = $region12
      $region11: #{tpu_custom_call.1} parent=5 // pred_region
        %s104 = ssub.s32 %s17, 1
        // Predicated region
        $region13: #{tpu_custom_call.1} parent=11 // pred_check
          %p105 = pneg %p64
        $region14: #{tpu_custom_call.1} parent=11 // pred_check_branch
          %107 = sbr.rel (%p105) target = $region16
        $region15: #{tpu_custom_call.1} parent=11 // pred_region
          %s109 = ssub.s32 1024, 1024
          %110 = vsyncadd [#allocation8], %s109
          %s111 = sshll.u32 [#allocation7], 4
          %s112 = int_to_ptr.vmem [resolvable:$true] %s111
          %117 = dma.hbm_to_vmem [thread:$0]  %s2, 1024, %s112, [#allocation8], 128, 128, 8
        $region16: #{tpu_custom_call.1} parent=11 // pred_fallthru
          _
      $region12: #{tpu_custom_call.1} parent=5 // pred_fallthru
        _
      %p118 = scmp.lt.s32.totalorder %s17, 2
      // Predicated region
      $region17: #{tpu_custom_call.1} parent=5 // pred_check
        %p119 = pneg %p118
      $region18: #{tpu_custom_call.1} parent=5 // pred_check_branch
        %121 = sbr.rel (%p119) target = $region20
      $region19: #{tpu_custom_call.1} parent=5 // pred_region
        // Predicated region
        $region21: #{tpu_custom_call.1} parent=19 // pred_check
          %p122 = pneg %p37
        $region22: #{tpu_custom_call.1} parent=19 // pred_check_branch
          %124 = sbr.rel (%p122) target = $region24
        $region23: #{tpu_custom_call.1} parent=19 // pred_region
          %s125 = sand.u32 %s27, 1
          %s126 = scalar_lea.sflag [#allocation5], %s125
          %s127 = sand.u32 %s27, 1
          %s128 = smul.addr %s127, 32
          %s129 = scalar_lea.vmem [#allocation4], %s128
          %s130 = smul.u32 4, %s17
          %s132 = ssub.s32 512, 512
          %133 = vsyncadd %s126, %s132
          %s134 = smul.addr %s130, 128
          %s135 = scalar_lea.hbm %s1, %s134
          %s136 = sshll.u32 %s129, 4
          %s137 = int_to_ptr.vmem [resolvable:$true] %s136
          %142 = dma.hbm_to_vmem [thread:$0]  %s135, 512, %s137, %s126, 128, 128, 8
        $region24: #{tpu_custom_call.1} parent=19 // pred_fallthru
          _
      $region20: #{tpu_custom_call.1} parent=5 // pred_fallthru
        _
      %p143 = scmp.le.s32.totalorder 1, %s17
      %p144 = scmp.lt.s32.totalorder %s17, 3
      %p145 = pnand %p143, %p144
      %p146 = pneg %p145
      // Predicated region
      $region25: #{tpu_custom_call.1} parent=5 // pred_check
        _
      $region26: #{tpu_custom_call.1} parent=5 // pred_check_branch
        %148 = sbr.rel (%p145) target = $region28
      $region27: #{tpu_custom_call.1} parent=5 // pred_region
        %s149 = ssub.s32 %s17, 1
        %s150 = sand.u32 %s30, 1
        %s151 = scalar_lea.sflag [#allocation5], %s150
        %s152 = sand.u32 %s30, 1
        %s153 = smul.addr %s152, 32
        %s154 = scalar_lea.vmem [#allocation4], %s153
        // Predicated region
        $region29: #{tpu_custom_call.1} parent=27 // pred_check
          %p155 = pneg %p43
        $region30: #{tpu_custom_call.1} parent=27 // pred_check_branch
          %157 = sbr.rel (%p155) target = $region32
        $region31: #{tpu_custom_call.1} parent=27 // pred_region
          %158 = dma.done %s151, 512
        $region32: #{tpu_custom_call.1} parent=27 // pred_fallthru
          _
        // Predicated region
        $region33: #{tpu_custom_call.1} parent=27 // pred_check
          %p159 = pneg %p64
        $region34: #{tpu_custom_call.1} parent=27 // pred_check_branch
          %161 = sbr.rel (%p159) target = $region36
        $region35: #{tpu_custom_call.1} parent=27 // pred_region
          %162 = dma.done [#allocation8], 1024
        $region36: #{tpu_custom_call.1} parent=27 // pred_fallthru
          _
        %s163 = sand.u32 %s30, 1
        %s164 = scalar_lea.sflag [#allocation5], %s163
        %s165 = sand.u32 %s30, 1
        %s166 = smul.addr %s165, 32
        %s167 = scalar_lea.vmem [#allocation4], %s166
        %p168 = pneg %p43
        %p169 = pneg %p40
        %p170 = pneg %p64
        %p171 = pneg %p61
        %p172 = pneg %p90
        %p173 = pneg %p87
        %s174 = sand.u32 %s77, 1
        %s175 = scalar_lea.sflag [#allocation6], %s174
        %s176 = sand.u32 %s77, 1
        %s177 = smul.addr %s176, 32
        %s178 = scalar_lea.vmem [#allocation9], %s177
        %s179 = smul.u32 4, %s22
        %s180 = smul.u32 4, %s22
        %s181 = smul.u32 %s22, 32
        %s182 = scalar_lea.vmem [#allocation7], %s181
        %v183 = vld [vmem:[%s182] sm:$0xff]
        %v184 = vld [vmem:[%s182 + $0x8] sm:$0xff]
        %v185 = vld [vmem:[%s182 + $0x10] sm:$0xff]
        %v186 = vld [vmem:[%s182 + $0x18] sm:$0xff]
        %v187 = vld [vmem:[%s154] sm:$0xff]
        %v188 = vld [vmem:[%s154 + $0x8] sm:$0xff]
        %v189 = vld [vmem:[%s154 + $0x10] sm:$0xff]
        %v190 = vld [vmem:[%s154 + $0x18] sm:$0xff]
        %v191 = vadd.f32 %v187, %v183
        %v192 = vadd.f32 %v188, %v184
        %v193 = vadd.f32 %v189, %v185
        %v194 = vadd.f32 %v190, %v186
        %195 = vst [vmem:[%s178] sm:$0xff] %v191
        %196 = vst [vmem:[%s178 + $0x8] sm:$0xff] %v192
        %197 = vst [vmem:[%s178 + $0x10] sm:$0xff] %v193
        %198 = vst [vmem:[%s178 + $0x18] sm:$0xff] %v194
        %s199 = sand.u32 %s77, 1
        %s200 = scalar_lea.sflag [#allocation6], %s199
        %s201 = sand.u32 %s77, 1
        %s202 = smul.addr %s201, 32
        %s203 = scalar_lea.vmem [#allocation9], %s202
        // Predicated region
        $region37: #{tpu_custom_call.1} parent=27 // pred_check
          %p204 = pneg %p87
        $region38: #{tpu_custom_call.1} parent=27 // pred_check_branch
          %206 = sbr.rel (%p204) target = $region40
        $region39: #{tpu_custom_call.1} parent=27 // pred_region
          %s207 = smul.u32 4, %s22
          %s209 = ssub.s32 512, 512
          %210 = vsyncadd %s200, %s209
          %s211 = smul.addr %s207, 128
          %s212 = scalar_lea.hbm %s3, %s211
          %s213 = sshll.u32 %s203, 4
          %s214 = int_to_ptr.vmem [resolvable:$true] %s213
          %219 = dma.vmem_to_hbm [thread:$0]  %s214, 512, %s212, %s200, 128, 128, 8
        $region40: #{tpu_custom_call.1} parent=27 // pred_fallthru
          _
      $region28: #{tpu_custom_call.1} parent=5 // pred_fallthru
        _
      %p220 = scmp.le.s32.totalorder 2, %s17
      // Predicated region
      $region41: #{tpu_custom_call.1} parent=5 // pred_check
        %p221 = pneg %p220
      $region42: #{tpu_custom_call.1} parent=5 // pred_check_branch
        %223 = sbr.rel (%p221) target = $region44
      $region43: #{tpu_custom_call.1} parent=5 // pred_region
        %s224 = ssub.s32 %s17, 2
        // Predicated region
        $region45: #{tpu_custom_call.1} parent=43 // pred_check
          %p225 = pneg %p93
        $region46: #{tpu_custom_call.1} parent=43 // pred_check_branch
          %227 = sbr.rel (%p225) target = $region48
        $region47: #{tpu_custom_call.1} parent=43 // pred_region
          %s228 = sand.u32 %s78, 1
          %s229 = scalar_lea.sflag [#allocation6], %s228
          %s230 = sand.u32 %s78, 1
          %s231 = smul.addr %s230, 32
          %s232 = scalar_lea.vmem [#allocation9], %s231
          %233 = dma.done %s229, 512
        $region48: #{tpu_custom_call.1} parent=43 // pred_fallthru
          _
      $region44: #{tpu_custom_call.1} parent=5 // pred_fallthru
        _
    $region6: #{tpu_custom_call.1} parent=1 // loop_footer
      %s21 = sadd.s32 1, %s17
    $region7: #{tpu_custom_call.1} parent=1 // loop_footer_branch
      %16 = sbr.rel target = $region3
    $region8: #{tpu_custom_call.1} parent=1 // loop_exit
      _
    %234 = vsyncpa [#allocation5], 1
    %s235 = scalar_lea.sflag [#allocation5], 1
    %236 = vsyncpa %s235, 1
    %237 = vsyncpa [#allocation8], 1
    %238 = vsyncpa [#allocation6], 1
    %s239 = scalar_lea.sflag [#allocation6], 1
    %240 = vsyncpa %s239, 1

</llo_original>
